<compile_context>
chip_gen: v7x
topology: tpu7x:2x2x1
jax: 0.10.0
libtpu: 0.0.40
codegen_flags: <defaults>
</compile_context>

<pallas_src>
import numpy as np
import jax
import jax.numpy as jnp
from jax import lax
from jax.experimental import pallas as pl
from jax.experimental.pallas import tpu as pltpu


_TARGET_CHUNK = 32 * 1024           # voxels per grid step (multiple of 128)
_LANES = 128
_VMEM_LIMIT = 48 * 1024 * 1024      # safe on v7x (64 MiB/TC) and v5e/v6e


def _round_up(x, m):
    return (x + m - 1) // m * m


def _make_mi_kernel(num_bins, minval, maxval, preterm, n_vox, chunk,
                    chunks_per_split, has_pad):
    bin_step = (maxval - minval) / (num_bins - 1)
    sqrt_p = float(np.sqrt(preterm))

    def mi_kernel(yt_ref, yp_ref, pab_ref):
        # yt_ref / yp_ref : (1,1,1,1,chunk) lane-dense voxel tiles
        # pab_ref         : (1,1,nb,nb) f32 output block, resident across the
        #                   chunk axis (joint-histogram accumulator)
        s = pl.program_id(1)
        c = pl.program_id(2)

        @pl.when(c == 0)
        def _init():
            pab_ref[...] = jnp.zeros_like(pab_ref)

        # bin centers with sqrt(preterm) folded in, on the sublane axis (nb,1)
        vbc = (lax.broadcasted_iota(jnp.int32, (num_bins, 1), 0)
               .astype(jnp.float32) * (bin_step * sqrt_p) + minval * sqrt_p)

        # (1, chunk) rows: clip (lower bound 0.0, faithful to the reference)
        # and fold sqrt(preterm) into the operands (review opt 2).
        yt = jnp.clip(yt_ref[0, 0, 0], 0.0, maxval) * sqrt_p
        yp = jnp.clip(yp_ref[0, 0, 0], 0.0, maxval) * sqrt_p

        # Gaussian soft assignment, lane-dense (nb, chunk)
        I_a = jnp.exp(-jnp.square(yt - vbc))
        I_b = jnp.exp(-jnp.square(yp - vbc))

        # Combined (1,chunk) normalization scale (review opt 1), EUP recips.
        # NOTE: pa/pb exactness relies on scale = ra*rb being applied to I_a
        # only, with I_b left unnormalized.  approx=True is ~12-bit accurate;
        # switch to approx=False if a tighter tolerance is ever required.
        ra = pl.reciprocal(jnp.sum(I_a, axis=0, keepdims=True), approx=True)
        rb = pl.reciprocal(jnp.sum(I_b, axis=0, keepdims=True), approx=True)
        scale = ra * rb

        if has_pad:
            # pad mask folded into the cheap (1,chunk) scale (review opt 9)
            idx = (lax.broadcasted_iota(jnp.int32, (1, chunk), 1)
                   + (s * chunks_per_split + c) * chunk)
            scale = jnp.where(idx < n_vox, scale, 0.0)

        # bf16 MXU operands, f32 accumulation (review opt 3)
        I_a_s = (I_a * scale).astype(jnp.bfloat16)
        I_b_c = I_b.astype(jnp.bfloat16)

        # joint-histogram contribution: contract the voxel (lane) axis of both
        # operands -> (nb, nb); no materialized transpose.
        pab_ref[0, 0] += lax.dot_general(
            I_a_s, I_b_c, dimension_numbers=(((1,), (1,)), ((), ())),
            preferred_element_type=jnp.float32)

    return mi_kernel


def mutual_information_loss(y_true, y_pred, sigma_ratio=1.0,
                            minval=0.0, maxval=1.0, num_bin=32):
    """Returns -MI(y_true, y_pred), matching the PyTorch module's forward."""
    bin_centers = np.linspace(minval, maxval, num=num_bin)
    sigma = np.mean(np.diff(bin_centers)) * sigma_ratio
    preterm = float(1.0 / (2.0 * sigma ** 2))

    B = y_true.shape[0]
    yt = jnp.reshape(y_true, (B, -1)).astype(jnp.float32)
    yp = jnp.reshape(y_pred, (B, -1)).astype(jnp.float32)
    n_vox = yt.shape[1]

    # lane-dense voxel chunk (multiple of 128); 2-way reduction split so both
    # v7x TensorCores get work even at B=1 (review opt 5)
    chunk = _TARGET_CHUNK if n_vox >= _TARGET_CHUNK else _round_up(n_vox, _LANES)
    n_chunks = -(-n_vox // chunk)
    n_splits = 2 if n_chunks >= 2 else 1
    cps = -(-n_chunks // n_splits)                  # chunks per split
    n_total = n_splits * cps * chunk
    n_pad = n_total - n_vox
    if n_pad:
        yt = jnp.pad(yt, ((0, 0), (0, n_pad)))
        yp = jnp.pad(yp, ((0, 0), (0, n_pad)))
    # (B, n_splits, cps, 1, chunk): last two dims of each block equal the full
    # array dims, and the last dim is a multiple of 128 (lane-dense DMA).
    yt5 = yt.reshape(B, n_splits, cps, 1, chunk)
    yp5 = yp.reshape(B, n_splits, cps, 1, chunk)

    kernel = _make_mi_kernel(num_bin, float(minval), float(maxval), preterm,
                             n_vox, chunk, cps, n_pad > 0)

    pab_parts = pl.pallas_call(
        kernel,
        out_shape=jax.ShapeDtypeStruct((B, n_splits, num_bin, num_bin),
                                       jnp.float32),
        grid_spec=pltpu.PrefetchScalarGridSpec(
            num_scalar_prefetch=0,
            grid=(B, n_splits, cps),
            in_specs=[
                pl.BlockSpec((1, 1, 1, 1, chunk),
                             lambda b, s, c: (b, s, c, 0, 0)),
                pl.BlockSpec((1, 1, 1, 1, chunk),
                             lambda b, s, c: (b, s, c, 0, 0)),
            ],
            out_specs=pl.BlockSpec((1, 1, num_bin, num_bin),
                                   lambda b, s, c: (b, s, 0, 0)),
        ),
        compiler_params=pltpu.CompilerParams(
            dimension_semantics=("parallel", "parallel", "arbitrary"),
            vmem_limit_bytes=_VMEM_LIMIT,
        ),
    )(yt5, yp5)

    # tiny (B, nb, nb) finalize in plain JAX (review opt 5)
    pab = jnp.sum(pab_parts, axis=1) / n_vox        # (B, nb, nb)
    pa = jnp.sum(pab, axis=2, keepdims=True)        # (B, nb, 1)  y_true marginal
    pb = jnp.sum(pab, axis=1, keepdims=True)        # (B, 1, nb)  y_pred marginal
    papb = pa * pb + 1e-6
    mi = jnp.sum(pab * jnp.log(pab / papb + 1e-6), axis=(1, 2))
    # forward() = -mi(y_true, y_pred);  mi() returns the batch mean
    return -jnp.mean(mi)


if __name__ == "__main__":
    key = jax.random.PRNGKey(0)
    k1, k2 = jax.random.split(key)
    # NCHW inputs, values in [0, 1] like normalized images
    x_true = jax.random.uniform(k1, (2, 4, 16, 16), dtype=jnp.float32)
    x_pred = jax.random.uniform(k2, (2, 4, 16, 16), dtype=jnp.float32)

    loss = mutual_information_loss(x_true, x_pred)
    jax.block_until_ready(loss)

    # pure-JAX f32 reference (mirrors the PyTorch module)
    def ref_mi(yt, yp, num_bin=32, maxval=1.0):
        bc = np.linspace(0.0, maxval, num_bin)
        preterm = 1.0 / (2.0 * (np.mean(np.diff(bc))) ** 2)
        vbc = jnp.asarray(bc, jnp.float32)[None, None, :]
        yt = jnp.clip(yt.reshape(yt.shape[0], -1), 0.0, maxval)[..., None]
        yp = jnp.clip(yp.reshape(yp.shape[0], -1), 0.0, maxval)[..., None]
        nvox = yp.shape[1]
        Ia = jnp.exp(-preterm * (yt - vbc) ** 2)
        Ia = Ia / jnp.sum(Ia, -1, keepdims=True)
        Ib = jnp.exp(-preterm * (yp - vbc) ** 2)
        Ib = Ib / jnp.sum(Ib, -1, keepdims=True)
        pab = jnp.einsum("bnk,bnl->bkl", Ia, Ib) / nvox
        pa = jnp.mean(Ia, 1, keepdims=True)
        pb = jnp.mean(Ib, 1, keepdims=True)
        papb = jnp.einsum("bok,bol->bkl", pa, pb) + 1e-6
        mi = jnp.sum(pab * jnp.log(pab / papb + 1e-6), axis=(1, 2))
        return -jnp.mean(mi)

    ref = ref_mi(x_true, x_pred)
    # tolerance accounts for the bf16 MXU operands + approx reciprocals
    np.testing.assert_allclose(np.asarray(loss), np.asarray(ref),
                               rtol=5e-3, atol=5e-4)
    print("KERNEL_OK")
</pallas_src>

<mosaic_0001>
module attributes {stable_mosaic.version = 11 : i64} {
  func.func @mi_kernel(%arg0: i32, %arg1: i32, %arg2: i32, %arg3: memref<1x1x1x1x1024xf32, #tpu.memory_space<vmem>>, %arg4: memref<1x1x1x1x1024xf32, #tpu.memory_space<vmem>>, %arg5: memref<1x1x32x32xf32, #tpu.memory_space<vmem>>) attributes {dimension_semantics = [#tpu.dimension_semantics<parallel>, #tpu.dimension_semantics<parallel>, #tpu.dimension_semantics<arbitrary>], iteration_bounds = array<i64: 2, 1, 1>, scalar_prefetch = 0 : i64, scratch_operands = 0 : i64, tpu.core_type = #tpu.core_type<tc>, window_params = [{transform_indices = @transform_0, window_bounds = array<i64: 1, 1, 1, 1, 1024>}, {transform_indices = @transform_1, window_bounds = array<i64: 1, 1, 1, 1, 1024>}, {transform_indices = @transform_2, window_bounds = array<i64: 1, 1, 32, 32>}]} {
    %c0_i32 = arith.constant 0 : i32
    %0 = arith.cmpi eq, %arg2, %c0_i32 : i32
    %1 = arith.extui %0 : i1 to i32
    %c0_i32_0 = arith.constant 0 : i32
    %2 = arith.cmpi ne, %1, %c0_i32_0 : i32
    scf.if %2 {
      %cst_30 = arith.constant 0.000000e+00 : f32
      %57 = vector.broadcast %cst_30 : f32 to vector<1x1x32x32xf32>
      %c0_31 = arith.constant 0 : index
      %c0_32 = arith.constant 0 : index
      %c0_33 = arith.constant 0 : index
      %c0_34 = arith.constant 0 : index
      %58 = vector.load %arg5[%c0_31, %c0_32, %c0_33, %c0_34] : memref<1x1x32x32xf32, #tpu.memory_space<vmem>>, vector<1x1x32x32xf32>
      tpu.vector_store %arg5[%c0_31, %c0_32, %c0_33, %c0_34], %57 {strides = array<i32>} : memref<1x1x32x32xf32, #tpu.memory_space<vmem>>, vector<1x1x32x32xf32>,
    } else {
    }
    %3 = tpu.iota {dimensions = array<i32: 0>} : vector<32x1xi32>
    %4 = arith.sitofp %3 : vector<32x1xi32> to vector<32x1xf32>
    %cst = arith.constant 0.707106769 : f32
    %5 = vector.broadcast %cst : f32 to vector<32x1xf32>
    %6 = arith.mulf %4, %5 : vector<32x1xf32>
    %cst_1 = arith.constant 0.000000e+00 : f32
    %7 = vector.broadcast %cst_1 : f32 to vector<32x1xf32>
    %8 = arith.addf %6, %7 : vector<32x1xf32>
    %c0 = arith.constant 0 : index
    %c0_2 = arith.constant 0 : index
    %c0_3 = arith.constant 0 : index
    %c0_4 = arith.constant 0 : index
    %c0_5 = arith.constant 0 : index
    %9 = vector.load %arg3[%c0, %c0_2, %c0_3, %c0_4, %c0_5] : memref<1x1x1x1x1024xf32, #tpu.memory_space<vmem>>, vector<1x1x1x1x1024xf32>
    %10 = vector.shape_cast %9 : vector<1x1x1x1x1024xf32> to vector<1x1024xf32>
    %cst_6 = arith.constant 0.000000e+00 : f32
    %cst_7 = arith.constant 1.000000e+00 : f32
    %11 = vector.broadcast %cst_6 : f32 to vector<1x1024xf32>
    %12 = arith.maximumf %11, %10 : vector<1x1024xf32>
    %13 = vector.broadcast %cst_7 : f32 to vector<1x1024xf32>
    %14 = arith.minimumf %13, %12 : vector<1x1024xf32>
    %cst_8 = arith.constant 21.920311 : f32
    %15 = vector.broadcast %cst_8 : f32 to vector<1x1024xf32>
    %16 = arith.mulf %14, %15 : vector<1x1024xf32>
    %c0_9 = arith.constant 0 : index
    %c0_10 = arith.constant 0 : index
    %c0_11 = arith.constant 0 : index
    %c0_12 = arith.constant 0 : index
    %c0_13 = arith.constant 0 : index
    %17 = vector.load %arg4[%c0_9, %c0_10, %c0_11, %c0_12, %c0_13] : memref<1x1x1x1x1024xf32, #tpu.memory_space<vmem>>, vector<1x1x1x1x1024xf32>
    %18 = vector.shape_cast %17 : vector<1x1x1x1x1024xf32> to vector<1x1024xf32>
    %cst_14 = arith.constant 0.000000e+00 : f32
    %cst_15 = arith.constant 1.000000e+00 : f32
    %19 = vector.broadcast %cst_14 : f32 to vector<1x1024xf32>
    %20 = arith.maximumf %19, %18 : vector<1x1024xf32>
    %21 = vector.broadcast %cst_15 : f32 to vector<1x1024xf32>
    %22 = arith.minimumf %21, %20 : vector<1x1024xf32>
    %cst_16 = arith.constant 21.920311 : f32
    %23 = vector.broadcast %cst_16 : f32 to vector<1x1024xf32>
    %24 = arith.mulf %22, %23 : vector<1x1024xf32>
    %25 = vector.broadcast %16 : vector<1x1024xf32> to vector<32x1024xf32>
    %26 = vector.broadcast %8 : vector<32x1xf32> to vector<32x1024xf32>
    %27 = arith.subf %25, %26 : vector<32x1024xf32>
    %28 = arith.mulf %27, %27 : vector<32x1024xf32>
    %cst_17 = arith.constant 0.000000e+00 : f32
    %29 = vector.broadcast %cst_17 : f32 to vector<32x1024xf32>
    %30 = arith.subf %29, %28 : vector<32x1024xf32>
    %31 = math.exp %30 : vector<32x1024xf32>
    %32 = vector.broadcast %24 : vector<1x1024xf32> to vector<32x1024xf32>
    %33 = vector.broadcast %8 : vector<32x1xf32> to vector<32x1024xf32>
    %34 = arith.subf %32, %33 : vector<32x1024xf32>
    %35 = arith.mulf %34, %34 : vector<32x1024xf32>
    %cst_18 = arith.constant 0.000000e+00 : f32
    %36 = vector.broadcast %cst_18 : f32 to vector<32x1024xf32>
    %37 = arith.subf %36, %35 : vector<32x1024xf32>
    %38 = math.exp %37 : vector<32x1024xf32>
    %cst_19 = arith.constant dense<0.000000e+00> : vector<1024xf32>
    %39 = vector.multi_reduction <add>, %31, %cst_19 [0] : vector<32x1024xf32> to vector<1024xf32>
    %40 = vector.shape_cast %39 : vector<1024xf32> to vector<1x1024xf32>
    %41 = tpu.reciprocal %40 {approx = true} : vector<1x1024xf32> -> vector<1x1024xf32>
    %cst_20 = arith.constant dense<0.000000e+00> : vector<1024xf32>
    %42 = vector.multi_reduction <add>, %38, %cst_20 [0] : vector<32x1024xf32> to vector<1024xf32>
    %43 = vector.shape_cast %42 : vector<1024xf32> to vector<1x1024xf32>
    %44 = tpu.reciprocal %43 {approx = true} : vector<1x1024xf32> -> vector<1x1024xf32>
    %45 = arith.mulf %41, %44 : vector<1x1024xf32>
    %46 = vector.broadcast %45 : vector<1x1024xf32> to vector<32x1024xf32>
    %47 = arith.mulf %31, %46 : vector<32x1024xf32>
    %48 = arith.truncf %47 : vector<32x1024xf32> to vector<32x1024xbf16>
    %49 = arith.truncf %38 : vector<32x1024xf32> to vector<32x1024xbf16>
    %c0_21 = arith.constant 0 : index
    %c0_22 = arith.constant 0 : index
    %c0_23 = arith.constant 0 : index
    %c0_24 = arith.constant 0 : index
    %50 = vector.load %arg5[%c0_21, %c0_22, %c0_23, %c0_24] : memref<1x1x32x32xf32, #tpu.memory_space<vmem>>, vector<1x1x32x32xf32>
    %51 = vector.shape_cast %50 : vector<1x1x32x32xf32> to vector<32x32xf32>
    %cst_25 = arith.constant dense<0.000000e+00> : vector<32x32xf32>
    %52 = tpu.matmul %48, %49, %cst_25 {dimension_numbers = #tpu.dot_dimension_numbers<[1], [1], [0], [0], [0, 0, 1, 0], [], []>} : vector<32x1024xbf16>, vector<32x1024xbf16>, vector<32x32xf32> -> vector<32x32xf32>
    %53 = arith.addf %51, %52 : vector<32x32xf32>
    %c0_26 = arith.constant 0 : index
    %c0_27 = arith.constant 0 : index
    %c0_28 = arith.constant 0 : index
    %c0_29 = arith.constant 0 : index
    %54 = vector.load %arg5[%c0_26, %c0_27, %c0_28, %c0_29] : memref<1x1x32x32xf32, #tpu.memory_space<vmem>>, vector<1x1x32x32xf32>
    %55 = vector.shape_cast %54 : vector<1x1x32x32xf32> to vector<32x32xf32>
    %56 = vector.shape_cast %53 : vector<32x32xf32> to vector<1x1x32x32xf32>
    tpu.vector_store %arg5[%c0_26, %c0_27, %c0_28, %c0_29], %56 {strides = array<i32>} : memref<1x1x32x32xf32, #tpu.memory_space<vmem>>, vector<1x1x32x32xf32>,
    return
  }
  func.func @transform_0(%arg0: i32, %arg1: i32, %arg2: i32) -> (i32, i32, i32, i32, i32) {
    %c0_i32 = arith.constant 0 : i32
    %c0_i32_0 = arith.constant 0 : i32
    %c0_i32_1 = arith.constant 0 : i32
    return %arg0, %arg1, %arg2, %c0_i32, %c0_i32_0 : i32, i32, i32, i32, i32
  }
  func.func @transform_1(%arg0: i32, %arg1: i32, %arg2: i32) -> (i32, i32, i32, i32, i32) {
    %c0_i32 = arith.constant 0 : i32
    %c0_i32_0 = arith.constant 0 : i32
    %c0_i32_1 = arith.constant 0 : i32
    return %arg0, %arg1, %arg2, %c0_i32, %c0_i32_0 : i32, i32, i32, i32, i32
  }
  func.func @transform_2(%arg0: i32, %arg1: i32, %arg2: i32) -> (i32, i32, i32, i32) {
    %c0_i32 = arith.constant 0 : i32
    %c0_i32_0 = arith.constant 0 : i32
    %c0_i32_1 = arith.constant 0 : i32
    return %arg0, %arg1, %c0_i32, %c0_i32_0 : i32, i32, i32, i32
  }
}

</mosaic_0001>

<llo_original>
// kernel: tpu_custom_call.1
$region0: #{tpu_custom_call.1}
  #allocation0 [shape = 'u32[]', space=smem, size = 0x4, offset = 0x4, fixed_abs, tag = 'smem constant byte address 0x4 - core index']
  #allocation1 [shape = 'u32[144,128]{1,0:T(1,128)}', space=vmem, size = 0x12000, scoped, tag = 'internal scratch']
  %s0 = inlined_call_operand.hbm [shape: f32[2,1,1,1,1024], index: 0, kind: input, shape index: {}]
  %s1 = inlined_call_operand.hbm [shape: f32[2,1,1,1,1024], index: 1, kind: input, shape index: {}]
  %s2 = inlined_call_operand.hbm [shape: f32[2,1,32,32], index: 2, kind: output, shape index: {}]
  %s3 = sld [smem:[#allocation0]]
  $region53: #{tpu_custom_call.1} parent=0
    _
  %s5 = ssub.s32 1, %s3
  %s6 = scalar_select 0, %s5, %s3
  $region1: #{tpu_custom_call.1} parent=0
    #allocation2 [shape = 'u8[8192]{0}', space=vmem, size = 0x2000, scoped, tag = 'input window, operand 0']
    #allocation3 [shape = 's32[2]{0}', space=sflag, size = 0x8, scoped, tag = 'scoped memory for tpu_custom_call.1']
    #allocation4 [shape = 's32[2]{0}', space=sflag, size = 0x8, scoped, tag = 'scoped memory for tpu_custom_call.1']
    #allocation5 [shape = 'u8[8192]{0}', space=vmem, size = 0x2000, scoped, tag = 'input window, operand 1']
    #allocation6 [shape = 's32[2]{0}', space=sflag, size = 0x8, scoped, tag = 'scoped memory for tpu_custom_call.1']
    #allocation7 [shape = 'u8[32768]{0}', space=vmem, size = 0x8000, scoped, tag = 'output window, operand 0']
    %7 = vsyncpa [#allocation3], 0
    %s8 = scalar_lea.sflag [#allocation3], 1
    %9 = vsyncpa %s8, 0
    %10 = vsyncpa [#allocation6], 0
    %s11 = scalar_lea.sflag [#allocation6], 1
    %12 = vsyncpa %s11, 0
    %13 = vsyncpa [#allocation4], 0
    %s14 = scalar_lea.sflag [#allocation4], 1
    %15 = vsyncpa %s14, 0
    loop: start=0, step=1, limit=4
    $region2: #{tpu_custom_call.1} parent=1 // loop_pre_header
      _
    $region3: #{tpu_custom_call.1} parent=1 // loop_header
      %s17 = sphi 0, %s21
      %p18 = scmp.ge.s32.totalorder %s17, 4
      %s24 = sphi 0, %s43
      %s25 = sphi 0, %s39
      %s26 = sphi 0, %s35
      %s27 = sphi 0, %s24
      %s28 = sphi 0, %s25
      %s29 = sphi 0, %s26
      %s30 = sphi 0, %s27
      %s31 = sphi 0, %s28
      %s32 = sphi 0, %s29
      %s50 = sphi 0, %s52
      %s53 = sphi 0, %s50
      %s54 = sphi 0, %s53
      %s70 = sphi 0, %s54
      %s80 = sphi 0, %s82
      %s83 = sphi 0, %s80
      %s84 = sphi 0, %s83
      %s100 = sphi 0, %s84
      %s108 = sphi 0, %s110
      %s111 = sphi 0, %s108
      %s112 = sphi 0, %s111
      %s128 = sphi 0, %s112
    $region4: #{tpu_custom_call.1} parent=1 // loop_header_branch
      %20 = sbr.rel (%p18) target = $region8
    $region5: #{tpu_custom_call.1} parent=1 // loop_body
      %s22 = ssub.s32 %s17, 1
      %s23 = ssub.s32 %s17, 2
      %s33 = sadd.s32 1, %s26
      %p34 = scmp.ge.s32.totalorder %s33, 1
      %s35 = scalar_select %p34, 0, %s33
      %s36 = sadd.s32 1, %s25
      %s37 = scalar_select %p34, %s36, %s25
      %p38 = scmp.ge.s32.totalorder %s37, 1
      %s39 = scalar_select %p38, 0, %s37
      %s40 = sadd.s32 1, %s24
      %s41 = scalar_select %p38, %s40, %s24
      %p42 = scmp.ge.s32.totalorder %s41, 2
      %s43 = scalar_select %p42, 0, %s41
      %s44 = ssub.s32 %s24, %s43
      %s45 = ssub.s32 %s25, %s39
      %s46 = sor.u32 %s44, %s45
      %s47 = ssub.s32 %s26, %s35
      %s48 = sor.u32 %s46, %s47
      %p49 = scmp.eq.s32.totalorder %s48, 0
      %s51 = sadd.s32 %s50, 1
      %s52 = scalar_select %p49, %s50, %s51
      %p55 = pneg %p49
      %p56 = scmp.eq.s32.totalorder %s17, 1
      %p57 = por %p55, %p56
      %p58 = scmp.ne.s32.totalorder %s50, %s53
      %p59 = scmp.eq.s32.totalorder %s17, 0
      %p60 = por %p58, %p59
      %p61 = scmp.ne.s32.totalorder %s50, %s53
      %p62 = scmp.eq.s32.totalorder %s22, 1
      %p63 = por %p61, %p62
      %p64 = scmp.ne.s32.totalorder %s53, %s54
      %p65 = scmp.eq.s32.totalorder %s22, 0
      %p66 = por %p64, %p65
      %p67 = scmp.ne.s32.totalorder %s53, %s54
      %p68 = scmp.eq.s32.totalorder %s23, 1
      %p69 = por %p67, %p68
      %p71 = scmp.ne.s32.totalorder %s54, %s70
      %p72 = scmp.eq.s32.totalorder %s23, 0
      %p73 = por %p71, %p72
      %s74 = ssub.s32 %s24, %s43
      %s75 = ssub.s32 %s25, %s39
      %s76 = sor.u32 %s74, %s75
      %s77 = ssub.s32 %s26, %s35
      %s78 = sor.u32 %s76, %s77
      %p79 = scmp.eq.s32.totalorder %s78, 0
      %s81 = sadd.s32 %s80, 1
      %s82 = scalar_select %p79, %s80, %s81
      %p85 = pneg %p79
      %p86 = scmp.eq.s32.totalorder %s17, 1
      %p87 = por %p85, %p86
      %p88 = scmp.ne.s32.totalorder %s80, %s83
      %p89 = scmp.eq.s32.totalorder %s17, 0
      %p90 = por %p88, %p89
      %p91 = scmp.ne.s32.totalorder %s80, %s83
      %p92 = scmp.eq.s32.totalorder %s22, 1
      %p93 = por %p91, %p92
      %p94 = scmp.ne.s32.totalorder %s83, %s84
      %p95 = scmp.eq.s32.totalorder %s22, 0
      %p96 = por %p94, %p95
      %p97 = scmp.ne.s32.totalorder %s83, %s84
      %p98 = scmp.eq.s32.totalorder %s23, 1
      %p99 = por %p97, %p98
      %p101 = scmp.ne.s32.totalorder %s84, %s100
      %p102 = scmp.eq.s32.totalorder %s23, 0
      %p103 = por %p101, %p102
      %s104 = ssub.s32 %s24, %s43
      %s105 = ssub.s32 %s25, %s39
      %s106 = sor.u32 %s104, %s105
      %p107 = scmp.eq.s32.totalorder %s106, 0
      %s109 = sadd.s32 %s108, 1
      %s110 = scalar_select %p107, %s108, %s109
      %p113 = pneg %p107
      %p114 = scmp.eq.s32.totalorder %s17, 1
      %p115 = por %p113, %p114
      %p116 = scmp.ne.s32.totalorder %s108, %s111
      %p117 = scmp.eq.s32.totalorder %s17, 0
      %p118 = por %p116, %p117
      %p119 = scmp.ne.s32.totalorder %s108, %s111
      %p120 = scmp.eq.s32.totalorder %s22, 1
      %p121 = por %p119, %p120
      %p122 = scmp.ne.s32.totalorder %s111, %s112
      %p123 = scmp.eq.s32.totalorder %s22, 0
      %p124 = por %p122, %p123
      %p125 = scmp.ne.s32.totalorder %s111, %s112
      %p126 = scmp.eq.s32.totalorder %s23, 1
      %p127 = por %p125, %p126
      %p129 = scmp.ne.s32.totalorder %s112, %s128
      %p130 = scmp.eq.s32.totalorder %s23, 0
      %p131 = por %p129, %p130
      %p132 = scmp.le.s32.totalorder 1, %s17
      %p133 = scmp.lt.s32.totalorder %s17, 3
      %p134 = pnand %p132, %p133
      %p135 = pneg %p134
      // Predicated region
      $region9: #{tpu_custom_call.1} parent=5 // pred_check
        _
      $region10: #{tpu_custom_call.1} parent=5 // pred_check_branch
        %137 = sbr.rel (%p134) target = $region12
      $region11: #{tpu_custom_call.1} parent=5 // pred_region
        %s138 = ssub.s32 %s17, 1
      $region12: #{tpu_custom_call.1} parent=5 // pred_fallthru
        _
      %p139 = scmp.lt.s32.totalorder %s17, 2
      // Predicated region
      $region13: #{tpu_custom_call.1} parent=5 // pred_check
        %p140 = pneg %p139
      $region14: #{tpu_custom_call.1} parent=5 // pred_check_branch
        %142 = sbr.rel (%p140) target = $region16
      $region15: #{tpu_custom_call.1} parent=5 // pred_region
        // Predicated region
        $region17: #{tpu_custom_call.1} parent=15 // pred_check
          %p143 = pneg %p60
        $region18: #{tpu_custom_call.1} parent=15 // pred_check_branch
          %145 = sbr.rel (%p143) target = $region20
        $region19: #{tpu_custom_call.1} parent=15 // pred_region
          %s146 = sand.u32 %s50, 1
          %s147 = scalar_lea.sflag [#allocation3], %s146
          %s148 = sand.u32 %s50, 1
          %s149 = smul.addr %s148, 8
          %s150 = scalar_lea.vmem [#allocation2], %s149
          %s152 = ssub.s32 128, 128
          %153 = vsyncadd %s147, %s152
          %s154 = smul.addr %s26, 8
          %s155 = smul.addr %s25, 8
          %s156 = sadd.s32 %s154, %s155
          %s157 = smul.addr %s24, 8
          %s158 = sadd.s32 %s156, %s157
          %s159 = smul.addr %s158, 16
          %s160 = scalar_lea.hbm %s0, %s159
          %s162 = sshll.u32 %s150, 4
          %s163 = int_to_ptr.vmem [resolvable:$true] %s162
          %165 = dma.hbm_to_vmem [thread:$0]  %s160, 128, %s163, %s147
        $region20: #{tpu_custom_call.1} parent=15 // pred_fallthru
          _
        // Predicated region
        $region21: #{tpu_custom_call.1} parent=15 // pred_check
          %p166 = pneg %p90
        $region22: #{tpu_custom_call.1} parent=15 // pred_check_branch
          %168 = sbr.rel (%p166) target = $region24
        $region23: #{tpu_custom_call.1} parent=15 // pred_region
          %s169 = sand.u32 %s80, 1
          %s170 = scalar_lea.sflag [#allocation6], %s169
          %s171 = sand.u32 %s80, 1
          %s172 = smul.addr %s171, 8
          %s173 = scalar_lea.vmem [#allocation5], %s172
          %s175 = ssub.s32 128, 128
          %176 = vsyncadd %s170, %s175
          %s177 = smul.addr %s26, 8
          %s178 = smul.addr %s25, 8
          %s179 = sadd.s32 %s177, %s178
          %s180 = smul.addr %s24, 8
          %s181 = sadd.s32 %s179, %s180
          %s182 = smul.addr %s181, 16
          %s183 = scalar_lea.hbm %s1, %s182
          %s185 = sshll.u32 %s173, 4
          %s186 = int_to_ptr.vmem [resolvable:$true] %s185
          %188 = dma.hbm_to_vmem [thread:$0]  %s183, 128, %s186, %s170
        $region24: #{tpu_custom_call.1} parent=15 // pred_fallthru
          _
      $region16: #{tpu_custom_call.1} parent=5 // pred_fallthru
        _
      %p189 = scmp.le.s32.totalorder 1, %s17
      %p190 = scmp.lt.s32.totalorder %s17, 3
      %p191 = pnand %p189, %p190
      %p192 = pneg %p191
      // Predicated region
      $region25: #{tpu_custom_call.1} parent=5 // pred_check
        _
      $region26: #{tpu_custom_call.1} parent=5 // pred_check_branch
        %194 = sbr.rel (%p191) target = $region28
      $region27: #{tpu_custom_call.1} parent=5 // pred_region
        %s195 = ssub.s32 %s17, 1
        %s196 = sand.u32 %s53, 1
        %s197 = scalar_lea.sflag [#allocation3], %s196
        %s198 = sand.u32 %s53, 1
        %s199 = smul.addr %s198, 8
        %s200 = scalar_lea.vmem [#allocation2], %s199
        // Predicated region
        $region29: #{tpu_custom_call.1} parent=27 // pred_check
          %p201 = pneg %p66
        $region30: #{tpu_custom_call.1} parent=27 // pred_check_branch
          %203 = sbr.rel (%p201) target = $region32
        $region31: #{tpu_custom_call.1} parent=27 // pred_region
          %204 = dma.done %s197, 128
        $region32: #{tpu_custom_call.1} parent=27 // pred_fallthru
          _
        %s205 = sand.u32 %s83, 1
        %s206 = scalar_lea.sflag [#allocation6], %s205
        %s207 = sand.u32 %s83, 1
        %s208 = smul.addr %s207, 8
        %s209 = scalar_lea.vmem [#allocation5], %s208
        // Predicated region
        $region33: #{tpu_custom_call.1} parent=27 // pred_check
          %p210 = pneg %p96
        $region34: #{tpu_custom_call.1} parent=27 // pred_check_branch
          %212 = sbr.rel (%p210) target = $region36
        $region35: #{tpu_custom_call.1} parent=27 // pred_region
          %213 = dma.done %s206, 128
        $region36: #{tpu_custom_call.1} parent=27 // pred_fallthru
          _
        %s214 = sand.u32 %s53, 1
        %s215 = scalar_lea.sflag [#allocation3], %s214
        %s216 = sand.u32 %s53, 1
        %s217 = smul.addr %s216, 8
        %s218 = scalar_lea.vmem [#allocation2], %s217
        %p219 = pneg %p66
        %p220 = pneg %p63
        %s221 = sand.u32 %s83, 1
        %s222 = scalar_lea.sflag [#allocation6], %s221
        %s223 = sand.u32 %s83, 1
        %s224 = smul.addr %s223, 8
        %s225 = scalar_lea.vmem [#allocation5], %s224
        %p226 = pneg %p96
        %p227 = pneg %p93
        %p228 = pneg %p124
        %p229 = pneg %p121
        %s230 = sand.u32 %s111, 1
        %s231 = scalar_lea.sflag [#allocation4], %s230
        %s232 = sand.u32 %s111, 1
        %s233 = smul.addr %s232, 32
        %s234 = scalar_lea.vmem [#allocation7], %s233
        %p236 = scmp.eq.s32.totalorder %s29, 0
        // Predicated region
        $region37: #{tpu_custom_call.1} parent=27 // pred_check
          %p237 = pneg %p236
        $region38: #{tpu_custom_call.1} parent=27 // pred_check_branch
          %239 = sbr.rel (%p237) target = $region40
        $region39: #{tpu_custom_call.1} parent=27 // pred_region
          %vm240 = vcmask 261120
          %241 = vst.msk [vmem:[%s234] sm:$0xff] %vm240, 0.0
          %242 = vst.msk [vmem:[%s234 + $0x8] sm:$0xff] %vm240, 0.0
          %243 = vst.msk [vmem:[%s234 + $0x10] sm:$0xff] %vm240, 0.0
          %244 = vst.msk [vmem:[%s234 + $0x18] sm:$0xff] %vm240, 0.0
        $region40: #{tpu_custom_call.1} parent=27 // pred_fallthru
          _
        %v245 = vlaneseq
        %v246 = vshrl.u32 %v245, 7
        %v247 = vadd.s32 %v246, 8
        %v248 = vadd.s32 %v246, 16
        %v249 = vadd.s32 %v246, 24
        %v250 = vcvt.s32.f32 %v246
        %v251 = vcvt.s32.f32 %v247
        %v252 = vcvt.s32.f32 %v248
        %v253 = vcvt.s32.f32 %v249
        %v254 = vmul.f32 %v250, 0.70710677
        %v255 = vmul.f32 %v251, 0.70710677
        %v256 = vmul.f32 %v252, 0.70710677
        %v257 = vmul.f32 %v253, 0.70710677
        %v258 = vadd.f32 %v254, 0.0
        %v259 = vadd.f32 %v255, 0.0
        %v260 = vadd.f32 %v256, 0.0
        %v261 = vadd.f32 %v257, 0.0
        %v262 = vld [vmem:[%s200] sm:$0xff]
        %v263 = vmax.f32 %v262, 0.0
        %v264 = vmin.f32 %v263, 1.0
        %v265 = vmul.f32 %v264, 21.920311
        %v266 = vld [vmem:[%s209] sm:$0xff]
        %v267 = vmax.f32 %v266, 0.0
        %v268 = vmin.f32 %v267, 1.0
        %v269 = vmul.f32 %v268, 21.920311
        %v271 = vlaneseq
        %v272 = vshrl.u32 %v271, 7
        %v273 = vsub.s32 0, %v272
        %v274 = vrot.slane %v265, %v273
        %v275 = vlaneseq
        %v276 = vshrl.u32 %v275, 7
        %v277 = vsub.s32 1, %v276
        %v278 = vrot.slane %v265, %v277
        %v279 = vlaneseq
        %v280 = vshrl.u32 %v279, 7
        %v281 = vsub.s32 2, %v280
        %v282 = vrot.slane %v265, %v281
        %v283 = vlaneseq
        %v284 = vshrl.u32 %v283, 7
        %v285 = vsub.s32 3, %v284
        %v286 = vrot.slane %v265, %v285
        %v287 = vlaneseq
        %v288 = vshrl.u32 %v287, 7
        %v289 = vsub.s32 4, %v288
        %v290 = vrot.slane %v265, %v289
        %v291 = vlaneseq
        %v292 = vshrl.u32 %v291, 7
        %v293 = vsub.s32 5, %v292
        %v294 = vrot.slane %v265, %v293
        %v295 = vlaneseq
        %v296 = vshrl.u32 %v295, 7
        %v297 = vsub.s32 6, %v296
        %v298 = vrot.slane %v265, %v297
        %v299 = vlaneseq
        %v300 = vshrl.u32 %v299, 7
        %v301 = vsub.s32 7, %v300
        %v302 = vrot.slane %v265, %v301
        %v311 = vsub.f32 %v274, %v258
        %v312 = vsub.f32 %v278, %v258
        %v313 = vsub.f32 %v282, %v258
        %v314 = vsub.f32 %v286, %v258
        %v315 = vsub.f32 %v290, %v258
        %v316 = vsub.f32 %v294, %v258
        %v317 = vsub.f32 %v298, %v258
        %v318 = vsub.f32 %v302, %v258
        %v319 = vsub.f32 %v274, %v259
        %v320 = vsub.f32 %v278, %v259
        %v321 = vsub.f32 %v282, %v259
        %v322 = vsub.f32 %v286, %v259
        %v323 = vsub.f32 %v290, %v259
        %v324 = vsub.f32 %v294, %v259
        %v325 = vsub.f32 %v298, %v259
        %v326 = vsub.f32 %v302, %v259
        %v327 = vsub.f32 %v274, %v260
        %v328 = vsub.f32 %v278, %v260
        %v329 = vsub.f32 %v282, %v260
        %v330 = vsub.f32 %v286, %v260
        %v331 = vsub.f32 %v290, %v260
        %v332 = vsub.f32 %v294, %v260
        %v333 = vsub.f32 %v298, %v260
        %v334 = vsub.f32 %v302, %v260
        %v335 = vsub.f32 %v274, %v261
        %v336 = vsub.f32 %v278, %v261
        %v337 = vsub.f32 %v282, %v261
        %v338 = vsub.f32 %v286, %v261
        %v339 = vsub.f32 %v290, %v261
        %v340 = vsub.f32 %v294, %v261
        %v341 = vsub.f32 %v298, %v261
        %v342 = vsub.f32 %v302, %v261
        %v343 = vmul.f32 %v311, %v311
        %v344 = vmul.f32 %v312, %v312
        %v345 = vmul.f32 %v313, %v313
        %v346 = vmul.f32 %v314, %v314
        %v347 = vmul.f32 %v315, %v315
        %v348 = vmul.f32 %v316, %v316
        %v349 = vmul.f32 %v317, %v317
        %v350 = vmul.f32 %v318, %v318
        %v351 = vmul.f32 %v319, %v319
        %v352 = vmul.f32 %v320, %v320
        %v353 = vmul.f32 %v321, %v321
        %v354 = vmul.f32 %v322, %v322
        %v355 = vmul.f32 %v323, %v323
        %v356 = vmul.f32 %v324, %v324
        %v357 = vmul.f32 %v325, %v325
        %v358 = vmul.f32 %v326, %v326
        %v359 = vmul.f32 %v327, %v327
        %v360 = vmul.f32 %v328, %v328
        %v361 = vmul.f32 %v329, %v329
        %v362 = vmul.f32 %v330, %v330
        %v363 = vmul.f32 %v331, %v331
        %v364 = vmul.f32 %v332, %v332
        %v365 = vmul.f32 %v333, %v333
        %v366 = vmul.f32 %v334, %v334
        %v367 = vmul.f32 %v335, %v335
        %v368 = vmul.f32 %v336, %v336
        %v369 = vmul.f32 %v337, %v337
        %v370 = vmul.f32 %v338, %v338
        %v371 = vmul.f32 %v339, %v339
        %v372 = vmul.f32 %v340, %v340
        %v373 = vmul.f32 %v341, %v341
        %v374 = vmul.f32 %v342, %v342
        %v375 = vsub.f32 0.0, %v343
        %v376 = vsub.f32 0.0, %v344
        %v377 = vsub.f32 0.0, %v345
        %v378 = vsub.f32 0.0, %v346
        %v379 = vsub.f32 0.0, %v347
        %v380 = vsub.f32 0.0, %v348
        %v381 = vsub.f32 0.0, %v349
        %v382 = vsub.f32 0.0, %v350
        %v383 = vsub.f32 0.0, %v351
        %v384 = vsub.f32 0.0, %v352
        %v385 = vsub.f32 0.0, %v353
        %v386 = vsub.f32 0.0, %v354
        %v387 = vsub.f32 0.0, %v355
        %v388 = vsub.f32 0.0, %v356
        %v389 = vsub.f32 0.0, %v357
        %v390 = vsub.f32 0.0, %v358
        %v391 = vsub.f32 0.0, %v359
        %v392 = vsub.f32 0.0, %v360
        %v393 = vsub.f32 0.0, %v361
        %v394 = vsub.f32 0.0, %v362
        %v395 = vsub.f32 0.0, %v363
        %v396 = vsub.f32 0.0, %v364
        %v397 = vsub.f32 0.0, %v365
        %v398 = vsub.f32 0.0, %v366
        %v399 = vsub.f32 0.0, %v367
        %v400 = vsub.f32 0.0, %v368
        %v401 = vsub.f32 0.0, %v369
        %v402 = vsub.f32 0.0, %v370
        %v403 = vsub.f32 0.0, %v371
        %v404 = vsub.f32 0.0, %v372
        %v405 = vsub.f32 0.0, %v373
        %v406 = vsub.f32 0.0, %v374
        %v407 = vmul.f32 %v375, 1.442695
        %v408 = vpow.pop %v407
        %v409 = vmul.f32 %v376, 1.442695
        %v410 = vpow.pop %v409
        %v411 = vmul.f32 %v377, 1.442695
        %v412 = vpow.pop %v411
        %v413 = vmul.f32 %v378, 1.442695
        %v414 = vpow.pop %v413
        %v415 = vmul.f32 %v379, 1.442695
        %v416 = vpow.pop %v415
        %v417 = vmul.f32 %v380, 1.442695
        %v418 = vpow.pop %v417
        %v419 = vmul.f32 %v381, 1.442695
        %v420 = vpow.pop %v419
        %v421 = vmul.f32 %v382, 1.442695
        %v422 = vpow.pop %v421
        %v423 = vmul.f32 %v383, 1.442695
        %v424 = vpow.pop %v423
        %v425 = vmul.f32 %v384, 1.442695
        %v426 = vpow.pop %v425
        %v427 = vmul.f32 %v385, 1.442695
        %v428 = vpow.pop %v427
        %v429 = vmul.f32 %v386, 1.442695
        %v430 = vpow.pop %v429
        %v431 = vmul.f32 %v387, 1.442695
        %v432 = vpow.pop %v431
        %v433 = vmul.f32 %v388, 1.442695
        %v434 = vpow.pop %v433
        %v435 = vmul.f32 %v389, 1.442695
        %v436 = vpow.pop %v435
        %v437 = vmul.f32 %v390, 1.442695
        %v438 = vpow.pop %v437
        %v439 = vmul.f32 %v391, 1.442695
        %v440 = vpow.pop %v439
        %v441 = vmul.f32 %v392, 1.442695
        %v442 = vpow.pop %v441
        %v443 = vmul.f32 %v393, 1.442695
        %v444 = vpow.pop %v443
        %v445 = vmul.f32 %v394, 1.442695
        %v446 = vpow.pop %v445
        %v447 = vmul.f32 %v395, 1.442695
        %v448 = vpow.pop %v447
        %v449 = vmul.f32 %v396, 1.442695
        %v450 = vpow.pop %v449
        %v451 = vmul.f32 %v397, 1.442695
        %v452 = vpow.pop %v451
        %v453 = vmul.f32 %v398, 1.442695
        %v454 = vpow.pop %v453
        %v455 = vmul.f32 %v399, 1.442695
        %v456 = vpow.pop %v455
        %v457 = vmul.f32 %v400, 1.442695
        %v458 = vpow.pop %v457
        %v459 = vmul.f32 %v401, 1.442695
        %v460 = vpow.pop %v459
        %v461 = vmul.f32 %v402, 1.442695
        %v462 = vpow.pop %v461
        %v463 = vmul.f32 %v403, 1.442695
        %v464 = vpow.pop %v463
        %v465 = vmul.f32 %v404, 1.442695
        %v466 = vpow.pop %v465
        %v467 = vmul.f32 %v405, 1.442695
        %v468 = vpow.pop %v467
        %v469 = vmul.f32 %v406, 1.442695
        %v470 = vpow.pop %v469
        %v472 = vlaneseq
        %v473 = vshrl.u32 %v472, 7
        %v474 = vsub.s32 0, %v473
        %v475 = vrot.slane %v269, %v474
        %v476 = vlaneseq
        %v477 = vshrl.u32 %v476, 7
        %v478 = vsub.s32 1, %v477
        %v479 = vrot.slane %v269, %v478
        %v480 = vlaneseq
        %v481 = vshrl.u32 %v480, 7
        %v482 = vsub.s32 2, %v481
        %v483 = vrot.slane %v269, %v482
        %v484 = vlaneseq
        %v485 = vshrl.u32 %v484, 7
        %v486 = vsub.s32 3, %v485
        %v487 = vrot.slane %v269, %v486
        %v488 = vlaneseq
        %v489 = vshrl.u32 %v488, 7
        %v490 = vsub.s32 4, %v489
        %v491 = vrot.slane %v269, %v490
        %v492 = vlaneseq
        %v493 = vshrl.u32 %v492, 7
        %v494 = vsub.s32 5, %v493
        %v495 = vrot.slane %v269, %v494
        %v496 = vlaneseq
        %v497 = vshrl.u32 %v496, 7
        %v498 = vsub.s32 6, %v497
        %v499 = vrot.slane %v269, %v498
        %v500 = vlaneseq
        %v501 = vshrl.u32 %v500, 7
        %v502 = vsub.s32 7, %v501
        %v503 = vrot.slane %v269, %v502
        %v512 = vsub.f32 %v475, %v258
        %v513 = vsub.f32 %v479, %v258
        %v514 = vsub.f32 %v483, %v258
        %v515 = vsub.f32 %v487, %v258
        %v516 = vsub.f32 %v491, %v258
        %v517 = vsub.f32 %v495, %v258
        %v518 = vsub.f32 %v499, %v258
        %v519 = vsub.f32 %v503, %v258
        %v520 = vsub.f32 %v475, %v259
        %v521 = vsub.f32 %v479, %v259
        %v522 = vsub.f32 %v483, %v259
        %v523 = vsub.f32 %v487, %v259
        %v524 = vsub.f32 %v491, %v259
        %v525 = vsub.f32 %v495, %v259
        %v526 = vsub.f32 %v499, %v259
        %v527 = vsub.f32 %v503, %v259
        %v528 = vsub.f32 %v475, %v260
        %v529 = vsub.f32 %v479, %v260
        %v530 = vsub.f32 %v483, %v260
        %v531 = vsub.f32 %v487, %v260
        %v532 = vsub.f32 %v491, %v260
        %v533 = vsub.f32 %v495, %v260
        %v534 = vsub.f32 %v499, %v260
        %v535 = vsub.f32 %v503, %v260
        %v536 = vsub.f32 %v475, %v261
        %v537 = vsub.f32 %v479, %v261
        %v538 = vsub.f32 %v483, %v261
        %v539 = vsub.f32 %v487, %v261
        %v540 = vsub.f32 %v491, %v261
        %v541 = vsub.f32 %v495, %v261
        %v542 = vsub.f32 %v499, %v261
        %v543 = vsub.f32 %v503, %v261
        %v544 = vmul.f32 %v512, %v512
        %v545 = vmul.f32 %v513, %v513
        %v546 = vmul.f32 %v514, %v514
        %v547 = vmul.f32 %v515, %v515
        %v548 = vmul.f32 %v516, %v516
        %v549 = vmul.f32 %v517, %v517
        %v550 = vmul.f32 %v518, %v518
        %v551 = vmul.f32 %v519, %v519
        %v552 = vmul.f32 %v520, %v520
        %v553 = vmul.f32 %v521, %v521
        %v554 = vmul.f32 %v522, %v522
        %v555 = vmul.f32 %v523, %v523
        %v556 = vmul.f32 %v524, %v524
        %v557 = vmul.f32 %v525, %v525
        %v558 = vmul.f32 %v526, %v526
        %v559 = vmul.f32 %v527, %v527
        %v560 = vmul.f32 %v528, %v528
        %v561 = vmul.f32 %v529, %v529
        %v562 = vmul.f32 %v530, %v530
        %v563 = vmul.f32 %v531, %v531
        %v564 = vmul.f32 %v532, %v532
        %v565 = vmul.f32 %v533, %v533
        %v566 = vmul.f32 %v534, %v534
        %v567 = vmul.f32 %v535, %v535
        %v568 = vmul.f32 %v536, %v536
        %v569 = vmul.f32 %v537, %v537
        %v570 = vmul.f32 %v538, %v538
        %v571 = vmul.f32 %v539, %v539
        %v572 = vmul.f32 %v540, %v540
        %v573 = vmul.f32 %v541, %v541
        %v574 = vmul.f32 %v542, %v542
        %v575 = vmul.f32 %v543, %v543
        %v576 = vsub.f32 0.0, %v544
        %v577 = vsub.f32 0.0, %v545
        %v578 = vsub.f32 0.0, %v546
        %v579 = vsub.f32 0.0, %v547
        %v580 = vsub.f32 0.0, %v548
        %v581 = vsub.f32 0.0, %v549
        %v582 = vsub.f32 0.0, %v550
        %v583 = vsub.f32 0.0, %v551
        %v584 = vsub.f32 0.0, %v552
        %v585 = vsub.f32 0.0, %v553
        %v586 = vsub.f32 0.0, %v554
        %v587 = vsub.f32 0.0, %v555
        %v588 = vsub.f32 0.0, %v556
        %v589 = vsub.f32 0.0, %v557
        %v590 = vsub.f32 0.0, %v558
        %v591 = vsub.f32 0.0, %v559
        %v592 = vsub.f32 0.0, %v560
        %v593 = vsub.f32 0.0, %v561
        %v594 = vsub.f32 0.0, %v562
        %v595 = vsub.f32 0.0, %v563
        %v596 = vsub.f32 0.0, %v564
        %v597 = vsub.f32 0.0, %v565
        %v598 = vsub.f32 0.0, %v566
        %v599 = vsub.f32 0.0, %v567
        %v600 = vsub.f32 0.0, %v568
        %v601 = vsub.f32 0.0, %v569
        %v602 = vsub.f32 0.0, %v570
        %v603 = vsub.f32 0.0, %v571
        %v604 = vsub.f32 0.0, %v572
        %v605 = vsub.f32 0.0, %v573
        %v606 = vsub.f32 0.0, %v574
        %v607 = vsub.f32 0.0, %v575
        %v608 = vmul.f32 %v576, 1.442695
        %v609 = vpow.pop %v608
        %v610 = vmul.f32 %v577, 1.442695
        %v611 = vpow.pop %v610
        %v612 = vmul.f32 %v578, 1.442695
        %v613 = vpow.pop %v612
        %v614 = vmul.f32 %v579, 1.442695
        %v615 = vpow.pop %v614
        %v616 = vmul.f32 %v580, 1.442695
        %v617 = vpow.pop %v616
        %v618 = vmul.f32 %v581, 1.442695
        %v619 = vpow.pop %v618
        %v620 = vmul.f32 %v582, 1.442695
        %v621 = vpow.pop %v620
        %v622 = vmul.f32 %v583, 1.442695
        %v623 = vpow.pop %v622
        %v624 = vmul.f32 %v584, 1.442695
        %v625 = vpow.pop %v624
        %v626 = vmul.f32 %v585, 1.442695
        %v627 = vpow.pop %v626
        %v628 = vmul.f32 %v586, 1.442695
        %v629 = vpow.pop %v628
        %v630 = vmul.f32 %v587, 1.442695
        %v631 = vpow.pop %v630
        %v632 = vmul.f32 %v588, 1.442695
        %v633 = vpow.pop %v632
        %v634 = vmul.f32 %v589, 1.442695
        %v635 = vpow.pop %v634
        %v636 = vmul.f32 %v590, 1.442695
        %v637 = vpow.pop %v636
        %v638 = vmul.f32 %v591, 1.442695
        %v639 = vpow.pop %v638
        %v640 = vmul.f32 %v592, 1.442695
        %v641 = vpow.pop %v640
        %v642 = vmul.f32 %v593, 1.442695
        %v643 = vpow.pop %v642
        %v644 = vmul.f32 %v594, 1.442695
        %v645 = vpow.pop %v644
        %v646 = vmul.f32 %v595, 1.442695
        %v647 = vpow.pop %v646
        %v648 = vmul.f32 %v596, 1.442695
        %v649 = vpow.pop %v648
        %v650 = vmul.f32 %v597, 1.442695
        %v651 = vpow.pop %v650
        %v652 = vmul.f32 %v598, 1.442695
        %v653 = vpow.pop %v652
        %v654 = vmul.f32 %v599, 1.442695
        %v655 = vpow.pop %v654
        %v656 = vmul.f32 %v600, 1.442695
        %v657 = vpow.pop %v656
        %v658 = vmul.f32 %v601, 1.442695
        %v659 = vpow.pop %v658
        %v660 = vmul.f32 %v602, 1.442695
        %v661 = vpow.pop %v660
        %v662 = vmul.f32 %v603, 1.442695
        %v663 = vpow.pop %v662
        %v664 = vmul.f32 %v604, 1.442695
        %v665 = vpow.pop %v664
        %v666 = vmul.f32 %v605, 1.442695
        %v667 = vpow.pop %v666
        %v668 = vmul.f32 %v606, 1.442695
        %v669 = vpow.pop %v668
        %v670 = vmul.f32 %v607, 1.442695
        %v671 = vpow.pop %v670
        %v672 = vadd.f32 %v408, %v424
        %v673 = vadd.f32 %v672, %v440
        %v674 = vadd.f32 %v673, %v456
        %v675 = vrot.slane %v674, 4
        %v676 = vadd.f32 %v674, %v675
        %v677 = vrot.slane %v676, 2
        %v678 = vadd.f32 %v676, %v677
        %v679 = vrot.slane %v678, 1
        %v680 = vadd.f32 %v678, %v679
        %v681 = vadd.f32 %v410, %v426
        %v682 = vadd.f32 %v681, %v442
        %v683 = vadd.f32 %v682, %v458
        %v684 = vrot.slane %v683, 4
        %v685 = vadd.f32 %v683, %v684
        %v686 = vrot.slane %v685, 2
        %v687 = vadd.f32 %v685, %v686
        %v688 = vrot.slane %v687, 1
        %v689 = vadd.f32 %v687, %v688
        %v690 = vadd.f32 %v412, %v428
        %v691 = vadd.f32 %v690, %v444
        %v692 = vadd.f32 %v691, %v460
        %v693 = vrot.slane %v692, 4
        %v694 = vadd.f32 %v692, %v693
        %v695 = vrot.slane %v694, 2
        %v696 = vadd.f32 %v694, %v695
        %v697 = vrot.slane %v696, 1
        %v698 = vadd.f32 %v696, %v697
        %v699 = vadd.f32 %v414, %v430
        %v700 = vadd.f32 %v699, %v446
        %v701 = vadd.f32 %v700, %v462
        %v702 = vrot.slane %v701, 4
        %v703 = vadd.f32 %v701, %v702
        %v704 = vrot.slane %v703, 2
        %v705 = vadd.f32 %v703, %v704
        %v706 = vrot.slane %v705, 1
        %v707 = vadd.f32 %v705, %v706
        %v708 = vadd.f32 %v416, %v432
        %v709 = vadd.f32 %v708, %v448
        %v710 = vadd.f32 %v709, %v464
        %v711 = vrot.slane %v710, 4
        %v712 = vadd.f32 %v710, %v711
        %v713 = vrot.slane %v712, 2
        %v714 = vadd.f32 %v712, %v713
        %v715 = vrot.slane %v714, 1
        %v716 = vadd.f32 %v714, %v715
        %v717 = vadd.f32 %v418, %v434
        %v718 = vadd.f32 %v717, %v450
        %v719 = vadd.f32 %v718, %v466
        %v720 = vrot.slane %v719, 4
        %v721 = vadd.f32 %v719, %v720
        %v722 = vrot.slane %v721, 2
        %v723 = vadd.f32 %v721, %v722
        %v724 = vrot.slane %v723, 1
        %v725 = vadd.f32 %v723, %v724
        %v726 = vadd.f32 %v420, %v436
        %v727 = vadd.f32 %v726, %v452
        %v728 = vadd.f32 %v727, %v468
        %v729 = vrot.slane %v728, 4
        %v730 = vadd.f32 %v728, %v729
        %v731 = vrot.slane %v730, 2
        %v732 = vadd.f32 %v730, %v731
        %v733 = vrot.slane %v732, 1
        %v734 = vadd.f32 %v732, %v733
        %v735 = vadd.f32 %v422, %v438
        %v736 = vadd.f32 %v735, %v454
        %v737 = vadd.f32 %v736, %v470
        %v738 = vrot.slane %v737, 4
        %v739 = vadd.f32 %v737, %v738
        %v740 = vrot.slane %v739, 2
        %v741 = vadd.f32 %v739, %v740
        %v742 = vrot.slane %v741, 1
        %v743 = vadd.f32 %v741, %v742
        %v744 = vrcp.pop %v680
        %v745 = vrcp.pop %v689
        %v746 = vrcp.pop %v698
        %v747 = vrcp.pop %v707
        %v748 = vrcp.pop %v716
        %v749 = vrcp.pop %v725
        %v750 = vrcp.pop %v734
        %v751 = vrcp.pop %v743
        %v752 = vadd.f32 %v609, %v625
        %v753 = vadd.f32 %v752, %v641
        %v754 = vadd.f32 %v753, %v657
        %v755 = vrot.slane %v754, 4
        %v756 = vadd.f32 %v754, %v755
        %v757 = vrot.slane %v756, 2
        %v758 = vadd.f32 %v756, %v757
        %v759 = vrot.slane %v758, 1
        %v760 = vadd.f32 %v758, %v759
        %v761 = vadd.f32 %v611, %v627
        %v762 = vadd.f32 %v761, %v643
        %v763 = vadd.f32 %v762, %v659
        %v764 = vrot.slane %v763, 4
        %v765 = vadd.f32 %v763, %v764
        %v766 = vrot.slane %v765, 2
        %v767 = vadd.f32 %v765, %v766
        %v768 = vrot.slane %v767, 1
        %v769 = vadd.f32 %v767, %v768
        %v770 = vadd.f32 %v613, %v629
        %v771 = vadd.f32 %v770, %v645
        %v772 = vadd.f32 %v771, %v661
        %v773 = vrot.slane %v772, 4
        %v774 = vadd.f32 %v772, %v773
        %v775 = vrot.slane %v774, 2
        %v776 = vadd.f32 %v774, %v775
        %v777 = vrot.slane %v776, 1
        %v778 = vadd.f32 %v776, %v777
        %v779 = vadd.f32 %v615, %v631
        %v780 = vadd.f32 %v779, %v647
        %v781 = vadd.f32 %v780, %v663
        %v782 = vrot.slane %v781, 4
        %v783 = vadd.f32 %v781, %v782
        %v784 = vrot.slane %v783, 2
        %v785 = vadd.f32 %v783, %v784
        %v786 = vrot.slane %v785, 1
        %v787 = vadd.f32 %v785, %v786
        %v788 = vadd.f32 %v617, %v633
        %v789 = vadd.f32 %v788, %v649
        %v790 = vadd.f32 %v789, %v665
        %v791 = vrot.slane %v790, 4
        %v792 = vadd.f32 %v790, %v791
        %v793 = vrot.slane %v792, 2
        %v794 = vadd.f32 %v792, %v793
        %v795 = vrot.slane %v794, 1
        %v796 = vadd.f32 %v794, %v795
        %v797 = vadd.f32 %v619, %v635
        %v798 = vadd.f32 %v797, %v651
        %v799 = vadd.f32 %v798, %v667
        %v800 = vrot.slane %v799, 4
        %v801 = vadd.f32 %v799, %v800
        %v802 = vrot.slane %v801, 2
        %v803 = vadd.f32 %v801, %v802
        %v804 = vrot.slane %v803, 1
        %v805 = vadd.f32 %v803, %v804
        %v806 = vadd.f32 %v621, %v637
        %v807 = vadd.f32 %v806, %v653
        %v808 = vadd.f32 %v807, %v669
        %v809 = vrot.slane %v808, 4
        %v810 = vadd.f32 %v808, %v809
        %v811 = vrot.slane %v810, 2
        %v812 = vadd.f32 %v810, %v811
        %v813 = vrot.slane %v812, 1
        %v814 = vadd.f32 %v812, %v813
        %v815 = vadd.f32 %v623, %v639
        %v816 = vadd.f32 %v815, %v655
        %v817 = vadd.f32 %v816, %v671
        %v818 = vrot.slane %v817, 4
        %v819 = vadd.f32 %v817, %v818
        %v820 = vrot.slane %v819, 2
        %v821 = vadd.f32 %v819, %v820
        %v822 = vrot.slane %v821, 1
        %v823 = vadd.f32 %v821, %v822
        %v824 = vrcp.pop %v760
        %v825 = vrcp.pop %v769
        %v826 = vrcp.pop %v778
        %v827 = vrcp.pop %v787
        %v828 = vrcp.pop %v796
        %v829 = vrcp.pop %v805
        %v830 = vrcp.pop %v814
        %v831 = vrcp.pop %v823
        %v832 = vmul.f32 %v744, %v824
        %v833 = vmul.f32 %v745, %v825
        %v834 = vmul.f32 %v746, %v826
        %v835 = vmul.f32 %v747, %v827
        %v836 = vmul.f32 %v748, %v828
        %v837 = vmul.f32 %v749, %v829
        %v838 = vmul.f32 %v750, %v830
        %v839 = vmul.f32 %v751, %v831
        %v840 = vmul.f32 %v408, %v832
        %v841 = vmul.f32 %v410, %v833
        %v842 = vmul.f32 %v412, %v834
        %v843 = vmul.f32 %v414, %v835
        %v844 = vmul.f32 %v416, %v836
        %v845 = vmul.f32 %v418, %v837
        %v846 = vmul.f32 %v420, %v838
        %v847 = vmul.f32 %v422, %v839
        %v848 = vmul.f32 %v424, %v832
        %v849 = vmul.f32 %v426, %v833
        %v850 = vmul.f32 %v428, %v834
        %v851 = vmul.f32 %v430, %v835
        %v852 = vmul.f32 %v432, %v836
        %v853 = vmul.f32 %v434, %v837
        %v854 = vmul.f32 %v436, %v838
        %v855 = vmul.f32 %v438, %v839
        %v856 = vmul.f32 %v440, %v832
        %v857 = vmul.f32 %v442, %v833
        %v858 = vmul.f32 %v444, %v834
        %v859 = vmul.f32 %v446, %v835
        %v860 = vmul.f32 %v448, %v836
        %v861 = vmul.f32 %v450, %v837
        %v862 = vmul.f32 %v452, %v838
        %v863 = vmul.f32 %v454, %v839
        %v864 = vmul.f32 %v456, %v832
        %v865 = vmul.f32 %v458, %v833
        %v866 = vmul.f32 %v460, %v834
        %v867 = vmul.f32 %v462, %v835
        %v868 = vmul.f32 %v464, %v836
        %v869 = vmul.f32 %v466, %v837
        %v870 = vmul.f32 %v468, %v838
        %v871 = vmul.f32 %v470, %v839
        %v872 = vpack.c.bf16 %v848, %v840
        %v873 = vpack.c.bf16 %v849, %v841
        %v874 = vpack.c.bf16 %v850, %v842
        %v875 = vpack.c.bf16 %v851, %v843
        %v876 = vpack.c.bf16 %v852, %v844
        %v877 = vpack.c.bf16 %v853, %v845
        %v878 = vpack.c.bf16 %v854, %v846
        %v879 = vpack.c.bf16 %v855, %v847
        %v880 = vpack.c.bf16 %v864, %v856
        %v881 = vpack.c.bf16 %v865, %v857
        %v882 = vpack.c.bf16 %v866, %v858
        %v883 = vpack.c.bf16 %v867, %v859
        %v884 = vpack.c.bf16 %v868, %v860
        %v885 = vpack.c.bf16 %v869, %v861
        %v886 = vpack.c.bf16 %v870, %v862
        %v887 = vpack.c.bf16 %v871, %v863
        %v888 = vpack.c.bf16 %v625, %v609
        %v889 = vpack.c.bf16 %v627, %v611
        %v890 = vpack.c.bf16 %v629, %v613
        %v891 = vpack.c.bf16 %v631, %v615
        %v892 = vpack.c.bf16 %v633, %v617
        %v893 = vpack.c.bf16 %v635, %v619
        %v894 = vpack.c.bf16 %v637, %v621
        %v895 = vpack.c.bf16 %v639, %v623
        %v896 = vpack.c.bf16 %v657, %v641
        %v897 = vpack.c.bf16 %v659, %v643
        %v898 = vpack.c.bf16 %v661, %v645
        %v899 = vpack.c.bf16 %v663, %v647
        %v900 = vpack.c.bf16 %v665, %v649
        %v901 = vpack.c.bf16 %v667, %v651
        %v902 = vpack.c.bf16 %v669, %v653
        %v903 = vpack.c.bf16 %v671, %v655
        %v904 = vld [vmem:[%s234] sm:$0xff]
        %v905 = vld [vmem:[%s234 + $0x8] sm:$0xff]
        %v906 = vld [vmem:[%s234 + $0x10] sm:$0xff]
        %v907 = vld [vmem:[%s234 + $0x18] sm:$0xff]
        %908 = vmatprep.subr.bf16.mxu0 %v889
        %909 = vmatpush1.bf16.xpose.msra.mxu0 %v888
        %910 = vmatprep.subr.bf16.mxu0 %v897
        %911 = vmatpush1.bf16.xpose.msra.mxu0 %v896
        %912 = vmatprep.subr.bf16.mxu0 0
        %913 = vmatpush1.bf16.xpose.msra.mxu0 0
        %914 = vmatprep.subr.bf16.mxu0 0
        %915 = vmatpush1.bf16.xpose.msra.mxu0 0
        %916 = vmatprep.subr.bf16.mxu0 0
        %917 = vmatpush1.bf16.xpose.msra.mxu0 0
        %918 = vmatprep.subr.bf16.mxu0 0
        %919 = vmatpush1.bf16.xpose.msra.mxu0 0
        %920 = vmatprep.subr.bf16.mxu0 0
        %921 = vmatpush1.bf16.xpose.msra.mxu0 0
        %922 = vmatprep.subr.bf16.mxu0 0
        %923 = vmatpush1.bf16.xpose.msra.mxu0 0
        %924 = vmatprep.subr.bf16.mxu0 0
        %925 = vmatpush1.bf16.xpose.msra.mxu0 0
        %926 = vmatprep.subr.bf16.mxu0 0
        %927 = vmatpush1.bf16.xpose.msra.mxu0 0
        %928 = vmatprep.subr.bf16.mxu0 0
        %929 = vmatpush1.bf16.xpose.msra.mxu0 0
        %930 = vmatprep.subr.bf16.mxu0 0
        %931 = vmatpush1.bf16.xpose.msra.mxu0 0
        %932 = vmatprep.subr.bf16.mxu0 0
        %933 = vmatpush1.bf16.xpose.msra.mxu0 0
        %934 = vmatprep.subr.bf16.mxu0 0
        %935 = vmatpush1.bf16.xpose.msra.mxu0 0
        %936 = vmatprep.subr.bf16.mxu0 0
        %937 = vmatpush1.bf16.xpose.msra.mxu0 0
        %938 = vmatprep.subr.bf16.mxu0 0
        %939 = vmatpush1.bf16.xpose.msra.mxu0 0
        %940 = vmatprep.mubr.bf16.mxu0 %v873
        %941 = vmatmul.mubr.bf16.gmra.mrb[0].mxu0 %v872
        %v942 = vpop.f32.mrb[0].mxu0
        %v943 = vadd.f32 0.0, %v942
        %v944 = vpop.f32.mrb[0].mxu0
        %v945 = vpop.f32.mrb[0].mxu0
        %v946 = vadd.f32 0.0, %v945
        %v947 = vpop.f32.mrb[0].mxu0
        %948 = vmatprep.mubr.bf16.mxu0 %v881
        %949 = vmatmul.mubr.bf16.gmra.mrb[0].mxu0 %v880
        %v950 = vpop.f32.mrb[0].mxu0
        %v951 = vadd.f32 0.0, %v950
        %v952 = vpop.f32.mrb[0].mxu0
        %v953 = vpop.f32.mrb[0].mxu0
        %v954 = vadd.f32 0.0, %v953
        %v955 = vpop.f32.mrb[0].mxu0
        %956 = vdwg.mxu0
        %957 = vmatprep.subr.bf16.mxu0 %v891
        %958 = vmatpush1.bf16.xpose.msra.mxu0 %v890
        %959 = vmatprep.subr.bf16.mxu0 %v899
        %960 = vmatpush1.bf16.xpose.msra.mxu0 %v898
        %961 = vmatprep.subr.bf16.mxu0 0
        %962 = vmatpush1.bf16.xpose.msra.mxu0 0
        %963 = vmatprep.subr.bf16.mxu0 0
        %964 = vmatpush1.bf16.xpose.msra.mxu0 0
        %965 = vmatprep.subr.bf16.mxu0 0
        %966 = vmatpush1.bf16.xpose.msra.mxu0 0
        %967 = vmatprep.subr.bf16.mxu0 0
        %968 = vmatpush1.bf16.xpose.msra.mxu0 0
        %969 = vmatprep.subr.bf16.mxu0 0
        %970 = vmatpush1.bf16.xpose.msra.mxu0 0
        %971 = vmatprep.subr.bf16.mxu0 0
        %972 = vmatpush1.bf16.xpose.msra.mxu0 0
        %973 = vmatprep.subr.bf16.mxu0 0
        %974 = vmatpush1.bf16.xpose.msra.mxu0 0
        %975 = vmatprep.subr.bf16.mxu0 0
        %976 = vmatpush1.bf16.xpose.msra.mxu0 0
        %977 = vmatprep.subr.bf16.mxu0 0
        %978 = vmatpush1.bf16.xpose.msra.mxu0 0
        %979 = vmatprep.subr.bf16.mxu0 0
        %980 = vmatpush1.bf16.xpose.msra.mxu0 0
        %981 = vmatprep.subr.bf16.mxu0 0
        %982 = vmatpush1.bf16.xpose.msra.mxu0 0
        %983 = vmatprep.subr.bf16.mxu0 0
        %984 = vmatpush1.bf16.xpose.msra.mxu0 0
        %985 = vmatprep.subr.bf16.mxu0 0
        %986 = vmatpush1.bf16.xpose.msra.mxu0 0
        %987 = vmatprep.subr.bf16.mxu0 0
        %988 = vmatpush1.bf16.xpose.msra.mxu0 0
        %989 = vmatprep.mubr.bf16.mxu0 %v875
        %990 = vmatmul.mubr.bf16.gmra.mrb[0].mxu0 %v874
        %v991 = vpop.f32.mrb[0].mxu0
        %v992 = vadd.f32 %v943, %v991
        %v993 = vpop.f32.mrb[0].mxu0
        %v994 = vpop.f32.mrb[0].mxu0
        %v995 = vadd.f32 %v946, %v994
        %v996 = vpop.f32.mrb[0].mxu0
        %997 = vmatprep.mubr.bf16.mxu0 %v883
        %998 = vmatmul.mubr.bf16.gmra.mrb[0].mxu0 %v882
        %v999 = vpop.f32.mrb[0].mxu0
        %v1000 = vadd.f32 %v951, %v999
        %v1001 = vpop.f32.mrb[0].mxu0
        %v1002 = vpop.f32.mrb[0].mxu0
        %v1003 = vadd.f32 %v954, %v1002
        %v1004 = vpop.f32.mrb[0].mxu0
        %1005 = vdwg.mxu0
        %1006 = vmatprep.subr.bf16.mxu0 %v893
        %1007 = vmatpush1.bf16.xpose.msra.mxu0 %v892
        %1008 = vmatprep.subr.bf16.mxu0 %v901
        %1009 = vmatpush1.bf16.xpose.msra.mxu0 %v900
        %1010 = vmatprep.subr.bf16.mxu0 0
        %1011 = vmatpush1.bf16.xpose.msra.mxu0 0
        %1012 = vmatprep.subr.bf16.mxu0 0
        %1013 = vmatpush1.bf16.xpose.msra.mxu0 0
        %1014 = vmatprep.subr.bf16.mxu0 0
        %1015 = vmatpush1.bf16.xpose.msra.mxu0 0
        %1016 = vmatprep.subr.bf16.mxu0 0
        %1017 = vmatpush1.bf16.xpose.msra.mxu0 0
        %1018 = vmatprep.subr.bf16.mxu0 0
        %1019 = vmatpush1.bf16.xpose.msra.mxu0 0
        %1020 = vmatprep.subr.bf16.mxu0 0
        %1021 = vmatpush1.bf16.xpose.msra.mxu0 0
        %1022 = vmatprep.subr.bf16.mxu0 0
        %1023 = vmatpush1.bf16.xpose.msra.mxu0 0
        %1024 = vmatprep.subr.bf16.mxu0 0
        %1025 = vmatpush1.bf16.xpose.msra.mxu0 0
        %1026 = vmatprep.subr.bf16.mxu0 0
        %1027 = vmatpush1.bf16.xpose.msra.mxu0 0
        %1028 = vmatprep.subr.bf16.mxu0 0
        %1029 = vmatpush1.bf16.xpose.msra.mxu0 0
        %1030 = vmatprep.subr.bf16.mxu0 0
        %1031 = vmatpush1.bf16.xpose.msra.mxu0 0
        %1032 = vmatprep.subr.bf16.mxu0 0
        %1033 = vmatpush1.bf16.xpose.msra.mxu0 0
        %1034 = vmatprep.subr.bf16.mxu0 0
        %1035 = vmatpush1.bf16.xpose.msra.mxu0 0
        %1036 = vmatprep.subr.bf16.mxu0 0
        %1037 = vmatpush1.bf16.xpose.msra.mxu0 0
        %1038 = vmatprep.mubr.bf16.mxu0 %v877
        %1039 = vmatmul.mubr.bf16.gmra.mrb[0].mxu0 %v876
        %v1040 = vpop.f32.mrb[0].mxu0
        %v1041 = vadd.f32 %v992, %v1040
        %v1042 = vpop.f32.mrb[0].mxu0
        %v1043 = vpop.f32.mrb[0].mxu0
        %v1044 = vadd.f32 %v995, %v1043
        %v1045 = vpop.f32.mrb[0].mxu0
        %1046 = vmatprep.mubr.bf16.mxu0 %v885
        %1047 = vmatmul.mubr.bf16.gmra.mrb[0].mxu0 %v884
        %v1048 = vpop.f32.mrb[0].mxu0
        %v1049 = vadd.f32 %v1000, %v1048
        %v1050 = vpop.f32.mrb[0].mxu0
        %v1051 = vpop.f32.mrb[0].mxu0
        %v1052 = vadd.f32 %v1003, %v1051
        %v1053 = vpop.f32.mrb[0].mxu0
        %1054 = vdwg.mxu0
        %1055 = vmatprep.subr.bf16.mxu0 %v895
        %1056 = vmatpush1.bf16.xpose.msra.mxu0 %v894
        %1057 = vmatprep.subr.bf16.mxu0 %v903
        %1058 = vmatpush1.bf16.xpose.msra.mxu0 %v902
        %1059 = vmatprep.subr.bf16.mxu0 0
        %1060 = vmatpush1.bf16.xpose.msra.mxu0 0
        %1061 = vmatprep.subr.bf16.mxu0 0
        %1062 = vmatpush1.bf16.xpose.msra.mxu0 0
        %1063 = vmatprep.subr.bf16.mxu0 0
        %1064 = vmatpush1.bf16.xpose.msra.mxu0 0
        %1065 = vmatprep.subr.bf16.mxu0 0
        %1066 = vmatpush1.bf16.xpose.msra.mxu0 0
        %1067 = vmatprep.subr.bf16.mxu0 0
        %1068 = vmatpush1.bf16.xpose.msra.mxu0 0
        %1069 = vmatprep.subr.bf16.mxu0 0
        %1070 = vmatpush1.bf16.xpose.msra.mxu0 0
        %1071 = vmatprep.subr.bf16.mxu0 0
        %1072 = vmatpush1.bf16.xpose.msra.mxu0 0
        %1073 = vmatprep.subr.bf16.mxu0 0
        %1074 = vmatpush1.bf16.xpose.msra.mxu0 0
        %1075 = vmatprep.subr.bf16.mxu0 0
        %1076 = vmatpush1.bf16.xpose.msra.mxu0 0
        %1077 = vmatprep.subr.bf16.mxu0 0
        %1078 = vmatpush1.bf16.xpose.msra.mxu0 0
        %1079 = vmatprep.subr.bf16.mxu0 0
        %1080 = vmatpush1.bf16.xpose.msra.mxu0 0
        %1081 = vmatprep.subr.bf16.mxu0 0
        %1082 = vmatpush1.bf16.xpose.msra.mxu0 0
        %1083 = vmatprep.subr.bf16.mxu0 0
        %1084 = vmatpush1.bf16.xpose.msra.mxu0 0
        %1085 = vmatprep.subr.bf16.mxu0 0
        %1086 = vmatpush1.bf16.xpose.msra.mxu0 0
        %1087 = vmatprep.mubr.bf16.mxu0 %v879
        %1088 = vmatmul.mubr.bf16.gmra.mrb[0].mxu0 %v878
        %v1089 = vpop.f32.mrb[0].mxu0
        %v1090 = vadd.f32 %v1041, %v1089
        %v1091 = vpop.f32.mrb[0].mxu0
        %v1092 = vpop.f32.mrb[0].mxu0
        %v1093 = vadd.f32 %v1044, %v1092
        %v1094 = vpop.f32.mrb[0].mxu0
        %1095 = vmatprep.mubr.bf16.mxu0 %v887
        %1096 = vmatmul.mubr.bf16.gmra.mrb[0].mxu0 %v886
        %v1097 = vpop.f32.mrb[0].mxu0
        %v1098 = vadd.f32 %v1049, %v1097
        %v1099 = vpop.f32.mrb[0].mxu0
        %v1100 = vpop.f32.mrb[0].mxu0
        %v1101 = vadd.f32 %v1052, %v1100
        %v1102 = vpop.f32.mrb[0].mxu0
        %1103 = vdwg.mxu0
        %v1104 = vadd.f32 %v904, %v1090
        %v1105 = vadd.f32 %v905, %v1093
        %v1106 = vadd.f32 %v906, %v1098
        %v1107 = vadd.f32 %v907, %v1101
        %vm1108 = vcmask 261120
        %1109 = vst.msk [vmem:[%s234] sm:$0xff] %vm1108, %v1104
        %1110 = vst.msk [vmem:[%s234 + $0x8] sm:$0xff] %vm1108, %v1105
        %1111 = vst.msk [vmem:[%s234 + $0x10] sm:$0xff] %vm1108, %v1106
        %1112 = vst.msk [vmem:[%s234 + $0x18] sm:$0xff] %vm1108, %v1107
        %s1113 = sand.u32 %s111, 1
        %s1114 = scalar_lea.sflag [#allocation4], %s1113
        %s1115 = sand.u32 %s111, 1
        %s1116 = smul.addr %s1115, 32
        %s1117 = scalar_lea.vmem [#allocation7], %s1116
        // Predicated region
        $region41: #{tpu_custom_call.1} parent=27 // pred_check
          %p1118 = pneg %p121
        $region42: #{tpu_custom_call.1} parent=27 // pred_check_branch
          %1120 = sbr.rel (%p1118) target = $region44
        $region43: #{tpu_custom_call.1} parent=27 // pred_region
          %s1122 = ssub.s32 512, 512
          %1123 = vsyncadd %s1114, %s1122
          %s1124 = smul.addr %s28, 4
          %s1125 = smul.addr %s27, 4
          %s1126 = sadd.s32 %s1124, %s1125
          %s1127 = smul.addr %s1126, 128
          %s1128 = scalar_lea.hbm %s2, %s1127
          %s1129 = sshll.u32 %s1117, 4
          %s1130 = int_to_ptr.vmem [resolvable:$true] %s1129
          %1135 = dma.vmem_to_hbm [thread:$0]  %s1130, 512, %s1128, %s1114, 128, 128, 8
        $region44: #{tpu_custom_call.1} parent=27 // pred_fallthru
          _
      $region28: #{tpu_custom_call.1} parent=5 // pred_fallthru
        _
      %p1136 = scmp.le.s32.totalorder 2, %s17
      // Predicated region
      $region45: #{tpu_custom_call.1} parent=5 // pred_check
        %p1137 = pneg %p1136
      $region46: #{tpu_custom_call.1} parent=5 // pred_check_branch
        %1139 = sbr.rel (%p1137) target = $region48
      $region47: #{tpu_custom_call.1} parent=5 // pred_region
        %s1140 = ssub.s32 %s17, 2
        // Predicated region
        $region49: #{tpu_custom_call.1} parent=47 // pred_check
          %p1141 = pneg %p127
        $region50: #{tpu_custom_call.1} parent=47 // pred_check_branch
          %1143 = sbr.rel (%p1141) target = $region52
        $region51: #{tpu_custom_call.1} parent=47 // pred_region
          %s1144 = sand.u32 %s112, 1
          %s1145 = scalar_lea.sflag [#allocation4], %s1144
          %s1146 = sand.u32 %s112, 1
          %s1147 = smul.addr %s1146, 32
          %s1148 = scalar_lea.vmem [#allocation7], %s1147
          %1149 = dma.done %s1145, 512
        $region52: #{tpu_custom_call.1} parent=47 // pred_fallthru
          _
      $region48: #{tpu_custom_call.1} parent=5 // pred_fallthru
        _
    $region6: #{tpu_custom_call.1} parent=1 // loop_footer
      %s21 = sadd.s32 1, %s17
    $region7: #{tpu_custom_call.1} parent=1 // loop_footer_branch
      %16 = sbr.rel target = $region3
    $region8: #{tpu_custom_call.1} parent=1 // loop_exit
      _
    %1150 = vsyncpa [#allocation3], 1
    %s1151 = scalar_lea.sflag [#allocation3], 1
    %1152 = vsyncpa %s1151, 1
    %1153 = vsyncpa [#allocation6], 1
    %s1154 = scalar_lea.sflag [#allocation6], 1
    %1155 = vsyncpa %s1154, 1
    %1156 = vsyncpa [#allocation4], 1
    %s1157 = scalar_lea.sflag [#allocation4], 1
    %1158 = vsyncpa %s1157, 1

</llo_original>
